<compile_context>
chip_gen: v6e
topology: v6e:2x2x1
jax: 0.10.0
libtpu: 0.0.40
codegen_flags: <defaults>
</compile_context>

<pallas_src>
import functools

import jax
import jax.numpy as jnp
from jax import lax
from jax.experimental import pallas as pl
from jax.experimental.pallas import tpu as pltpu


def _layernorm_kernel(x_ref, g_ref, b_ref, o_ref, *, eps, n, chunk_rows,
                      num_chunks, unroll):
    """One sample per grid step.  x_ref: (1, R, L).  g/b_ref: (1, R, 1).

    Matches the torch module: mean/std over the whole sample, unbiased std
    (divide by N-1), eps added to std (NOT to variance), per-channel affine
    (channels map to whole rows of the block).
    """
    # ---- pass 1: fused sum / sum-of-squares, chunked over rows ------------
    def stats_body(i, carry):
        s, ss = carry
        r0 = pl.multiple_of(i * chunk_rows, chunk_rows)
        xc = x_ref[0, pl.ds(r0, chunk_rows), :].astype(jnp.float32)
        return s + jnp.sum(xc), ss + jnp.sum(xc * xc)

    s, ss = lax.fori_loop(0, num_chunks, stats_body,
                          (jnp.float32(0.0), jnp.float32(0.0)),
                          unroll=unroll)

    mean = s / n
    # One-pass unbiased variance (fp32 accumulation; guard tiny negative
    # rounding and the degenerate n == 1 case).
    var = jnp.maximum((ss - s * mean) / max(n - 1, 1), 0.0)
    # Scalar per sample -> exact divide is essentially free; approx
    # reciprocal would risk the 1e-4 tolerance for zero gain here.
    inv = 1.0 / (jnp.sqrt(var) + eps)

    # ---- pass 2: y = x*scale + bias, streamed chunk by chunk ---------------
    def write_body(i, carry):
        r0 = pl.multiple_of(i * chunk_rows, chunk_rows)
        xc = x_ref[0, pl.ds(r0, chunk_rows), :].astype(jnp.float32)
        g = g_ref[0, pl.ds(r0, chunk_rows), :].astype(jnp.float32)   # (rows,1)
        b = b_ref[0, pl.ds(r0, chunk_rows), :].astype(jnp.float32)   # (rows,1)
        sc = g * inv                    # tiny (rows, 1) ops
        bi = b - mean * sc
        o_ref[0, pl.ds(r0, chunk_rows), :] = (xc * sc + bi).astype(o_ref.dtype)
        return carry

    lax.fori_loop(0, num_chunks, write_body, 0, unroll=unroll)


def _pick_chunk_rows(rows, max_rows=256):
    """Largest divisor of `rows` that is <= max_rows (whole block if small)."""
    if rows <= max_rows:
        return rows
    for c in range(max_rows, 0, -1):
        if rows % c == 0:
            return c
    return rows


def layer_norm(x, gamma, beta, eps=1e-5, affine=True):
    """x: (B, C, H, W) float32.  gamma, beta: (C,).  Returns (B, C, H, W)."""
    B, C, H, W = x.shape
    HW = H * W
    n = C * HW

    if not affine:
        gamma = jnp.ones((C,), x.dtype)
        beta = jnp.zeros((C,), x.dtype)

    # Lane-dense layout: (B, R, 128) when HW is a multiple of 128 so each
    # channel owns whole rows; otherwise fall back to one row per channel.
    if HW % 128 == 0:
        L = 128
        rows_per_channel = HW // 128
    else:
        # TODO(synk): pad / ragged-lane handling for HW not a multiple of 128
        # (fallback uses one masked row per channel: correct, slower stores).
        L = HW
        rows_per_channel = 1
    R = C * rows_per_channel

    x2 = x.reshape(B, R, L)
    g2 = jnp.repeat(gamma.astype(x.dtype), rows_per_channel).reshape(1, R, 1)
    b2 = jnp.repeat(beta.astype(x.dtype), rows_per_channel).reshape(1, R, 1)

    chunk_rows = _pick_chunk_rows(R)
    num_chunks = R // chunk_rows
    unroll = num_chunks <= 8

    kernel = functools.partial(
        _layernorm_kernel, eps=eps, n=n, chunk_rows=chunk_rows,
        num_chunks=num_chunks, unroll=unroll)

    # Explicit VMEM budget: double-buffered in + out blocks + headroom,
    # capped below v7x's 64 MiB physical VMEM.
    block_bytes = R * L * x.dtype.itemsize
    vmem_limit = int(min(56 * 2**20, max(32 * 2**20, 6 * block_bytes)))
    # TODO(synk): for samples larger than this budget, split rows onto a second
    # ("arbitrary") grid axis with scratch sum/sumsq accumulators + a separate
    # normalize pass (two-pass streaming) instead of one block per sample.

    # Advisory cost hint: read x twice (stats + write), write once; ~5 VPU
    # ops per element; one sqrt per sample.
    cost = pl.CostEstimate(
        flops=5 * B * n,
        transcendentals=B,
        bytes_accessed=3 * B * n * x.dtype.itemsize,
    )

    out = pl.pallas_call(
        kernel,
        out_shape=jax.ShapeDtypeStruct((B, R, L), x.dtype),
        grid_spec=pltpu.PrefetchScalarGridSpec(
            num_scalar_prefetch=0,
            grid=(B,),
            in_specs=[
                pl.BlockSpec((1, R, L), lambda b: (b, 0, 0)),
                pl.BlockSpec((1, R, 1), lambda b: (0, 0, 0)),
                pl.BlockSpec((1, R, 1), lambda b: (0, 0, 0)),
            ],
            out_specs=pl.BlockSpec((1, R, L), lambda b: (b, 0, 0)),
        ),
        compiler_params=pltpu.CompilerParams(
            dimension_semantics=("parallel",),
            vmem_limit_bytes=vmem_limit,
        ),
        cost_estimate=cost,
    )(x2, g2, b2)
    return out.reshape(B, C, H, W)


def _reference(x, gamma, beta, eps=1e-5):
    B = x.shape[0]
    flat = x.reshape(B, -1)
    mean = flat.mean(axis=1).reshape(B, 1, 1, 1)
    std = flat.std(axis=1, ddof=1).reshape(B, 1, 1, 1)  # unbiased, like torch
    y = (x - mean) / (std + eps)
    y = y * gamma.reshape(1, -1, 1, 1) + beta.reshape(1, -1, 1, 1)
    return y


if __name__ == "__main__":
    key = jax.random.PRNGKey(0)
    kx, kg = jax.random.split(key)

    B, C, H, W = 2, 4, 16, 16
    x = jax.random.normal(kx, (B, C, H, W), dtype=jnp.float32)
    # gamma ~ U[0,1) (torch .uniform_()), beta = zeros  -- deterministic init
    gamma = jax.random.uniform(kg, (C,), dtype=jnp.float32)
    beta = jnp.zeros((C,), dtype=jnp.float32)

    out = layer_norm(x, gamma, beta, eps=1e-5, affine=True)
    out = jax.block_until_ready(out)

    ref = _reference(x, gamma, beta, eps=1e-5)
    assert jnp.allclose(out, ref, atol=1e-4, rtol=1e-4), "mismatch vs reference"
    print("KERNEL_OK")
</pallas_src>

<mosaic_0001>
module attributes {stable_mosaic.version = 11 : i64} {
  func.func @_layernorm_kernel(%arg0: i32, %arg1: memref<1x8x128xf32, #tpu.memory_space<vmem>>, %arg2: memref<1x8x1xf32, #tpu.memory_space<vmem>>, %arg3: memref<1x8x1xf32, #tpu.memory_space<vmem>>, %arg4: memref<1x8x128xf32, #tpu.memory_space<vmem>>) attributes {dimension_semantics = [#tpu.dimension_semantics<parallel>], iteration_bounds = array<i64: 2>, scalar_prefetch = 0 : i64, scratch_operands = 0 : i64, tpu.core_type = #tpu.core_type<tc>, window_params = [{transform_indices = @transform_0, window_bounds = array<i64: 1, 8, 128>}, {pipeline_mode = #tpu.pipeline_mode<synchronous>, transform_indices = @transform_1, window_bounds = array<i64: 1, 8, 1>}, {pipeline_mode = #tpu.pipeline_mode<synchronous>, transform_indices = @transform_2, window_bounds = array<i64: 1, 8, 1>}, {transform_indices = @transform_3, window_bounds = array<i64: 1, 8, 128>}]} {
    %cst = arith.constant 0.000000e+00 : f32
    %cst_0 = arith.constant 0.000000e+00 : f32
    %c0_i32 = arith.constant 0 : i32
    %c8_i32 = arith.constant 8 : i32
    %0 = arith.muli %c0_i32, %c8_i32 : i32
    %1 = tpu.assume_multiple %0, 8 : i32
    %c0 = arith.constant 0 : index
    %2 = arith.index_cast %1 : i32 to index
    %c0_1 = arith.constant 0 : index
    %3 = vector.load %arg1[%c0, %2, %c0_1] : memref<1x8x128xf32, #tpu.memory_space<vmem>>, vector<1x8x128xf32>
    %4 = vector.shape_cast %3 : vector<1x8x128xf32> to vector<8x128xf32>
    %5 = vector.shape_cast %4 : vector<8x128xf32> to vector<1x8x128xf32>
    %cst_2 = arith.constant dense<0.000000e+00> : vector<1xf32>
    %6 = vector.multi_reduction <add>, %5, %cst_2 [1, 2] : vector<1x8x128xf32> to vector<1xf32>
    %7 = vector.shape_cast %6 : vector<1xf32> to vector<1x1x1xf32>
    %8 = vector.extract %7[0, 0, 0] : f32 from vector<1x1x1xf32>
    %9 = arith.addf %cst, %8 : f32
    %10 = arith.mulf %4, %4 : vector<8x128xf32>
    %11 = vector.shape_cast %10 : vector<8x128xf32> to vector<1x8x128xf32>
    %cst_3 = arith.constant dense<0.000000e+00> : vector<1xf32>
    %12 = vector.multi_reduction <add>, %11, %cst_3 [1, 2] : vector<1x8x128xf32> to vector<1xf32>
    %13 = vector.shape_cast %12 : vector<1xf32> to vector<1x1x1xf32>
    %14 = vector.extract %13[0, 0, 0] : f32 from vector<1x1x1xf32>
    %15 = arith.addf %cst_0, %14 : f32
    %c1_i32 = arith.constant 1 : i32
    %cst_4 = arith.constant 1.024000e+03 : f32
    %16 = arith.divf %9, %cst_4 : f32
    %17 = arith.mulf %9, %16 : f32
    %18 = arith.subf %15, %17 : f32
    %cst_5 = arith.constant 1.023000e+03 : f32
    %19 = arith.divf %18, %cst_5 : f32
    %cst_6 = arith.constant 0.000000e+00 : f32
    %20 = arith.maximumf %19, %cst_6 : f32
    %21 = math.sqrt %20 : f32
    %cst_7 = arith.constant 9.99999974E-6 : f32
    %22 = arith.addf %21, %cst_7 : f32
    %cst_8 = arith.constant 1.000000e+00 : f32
    %23 = arith.divf %cst_8, %22 : f32
    %c0_i32_9 = arith.constant 0 : i32
    %c8_i32_10 = arith.constant 8 : i32
    %24 = arith.muli %c0_i32_9, %c8_i32_10 : i32
    %25 = tpu.assume_multiple %24, 8 : i32
    %c0_11 = arith.constant 0 : index
    %26 = arith.index_cast %25 : i32 to index
    %c0_12 = arith.constant 0 : index
    %27 = vector.load %arg1[%c0_11, %26, %c0_12] : memref<1x8x128xf32, #tpu.memory_space<vmem>>, vector<1x8x128xf32>
    %28 = vector.shape_cast %27 : vector<1x8x128xf32> to vector<8x128xf32>
    %c0_13 = arith.constant 0 : index
    %29 = arith.index_cast %25 : i32 to index
    %c0_14 = arith.constant 0 : index
    %30 = vector.load %arg2[%c0_13, %29, %c0_14] : memref<1x8x1xf32, #tpu.memory_space<vmem>>, vector<1x8x1xf32>
    %31 = vector.shape_cast %30 : vector<1x8x1xf32> to vector<8x1xf32>
    %c0_15 = arith.constant 0 : index
    %32 = arith.index_cast %25 : i32 to index
    %c0_16 = arith.constant 0 : index
    %33 = vector.load %arg3[%c0_15, %32, %c0_16] : memref<1x8x1xf32, #tpu.memory_space<vmem>>, vector<1x8x1xf32>
    %34 = vector.shape_cast %33 : vector<1x8x1xf32> to vector<8x1xf32>
    %35 = vector.broadcast %23 : f32 to vector<8x1xf32>
    %36 = arith.mulf %31, %35 : vector<8x1xf32>
    %37 = vector.broadcast %16 : f32 to vector<8x1xf32>
    %38 = arith.mulf %37, %36 : vector<8x1xf32>
    %39 = arith.subf %34, %38 : vector<8x1xf32>
    %40 = vector.broadcast %36 : vector<8x1xf32> to vector<8x128xf32>
    %41 = arith.mulf %28, %40 : vector<8x128xf32>
    %42 = vector.broadcast %39 : vector<8x1xf32> to vector<8x128xf32>
    %43 = arith.addf %41, %42 : vector<8x128xf32>
    %c0_17 = arith.constant 0 : index
    %44 = arith.index_cast %25 : i32 to index
    %c0_18 = arith.constant 0 : index
    %45 = vector.load %arg4[%c0_17, %44, %c0_18] : memref<1x8x128xf32, #tpu.memory_space<vmem>>, vector<1x8x128xf32>
    %46 = vector.shape_cast %45 : vector<1x8x128xf32> to vector<8x128xf32>
    %47 = vector.shape_cast %43 : vector<8x128xf32> to vector<1x8x128xf32>
    tpu.vector_store %arg4[%c0_17, %44, %c0_18], %47 {strides = array<i32>} : memref<1x8x128xf32, #tpu.memory_space<vmem>>, vector<1x8x128xf32>,
    %c1_i32_19 = arith.constant 1 : i32
    return
  }
  func.func @transform_0(%arg0: i32) -> (i32, i32, i32) {
    %c0_i32 = arith.constant 0 : i32
    %c0_i32_0 = arith.constant 0 : i32
    %c0_i32_1 = arith.constant 0 : i32
    return %arg0, %c0_i32, %c0_i32_0 : i32, i32, i32
  }
  func.func @transform_1(%arg0: i32) -> (i32, i32, i32) {
    %c0_i32 = arith.constant 0 : i32
    %c0_i32_0 = arith.constant 0 : i32
    %c0_i32_1 = arith.constant 0 : i32
    %c0_i32_2 = arith.constant 0 : i32
    return %c0_i32, %c0_i32_0, %c0_i32_1 : i32, i32, i32
  }
  func.func @transform_2(%arg0: i32) -> (i32, i32, i32) {
    %c0_i32 = arith.constant 0 : i32
    %c0_i32_0 = arith.constant 0 : i32
    %c0_i32_1 = arith.constant 0 : i32
    %c0_i32_2 = arith.constant 0 : i32
    return %c0_i32, %c0_i32_0, %c0_i32_1 : i32, i32, i32
  }
  func.func @transform_3(%arg0: i32) -> (i32, i32, i32) {
    %c0_i32 = arith.constant 0 : i32
    %c0_i32_0 = arith.constant 0 : i32
    %c0_i32_1 = arith.constant 0 : i32
    return %arg0, %c0_i32, %c0_i32_0 : i32, i32, i32
  }
}

</mosaic_0001>

<llo_original>
// kernel: tpu_custom_call.1
$region0: #{tpu_custom_call.1}
  #allocation0 [shape = 'u32[]', space=smem, size = 0x4, offset = 0x4, fixed_abs, tag = 'smem constant byte address 0x4 - core index']
  #allocation1 [shape = 'u32[144,128]{1,0:T(1,128)}', space=vmem, size = 0x12000, scoped, tag = 'internal scratch']
  %s0 = inlined_call_operand.vmem [shape: f32[2,8,128], index: 0, kind: input, shape index: {}]
  %s1 = inlined_call_operand.vmem [shape: f32[1,8,1], index: 1, kind: input, shape index: {}]
  %s2 = inlined_call_operand.vmem [shape: f32[1,8,1], index: 2, kind: input, shape index: {}]
  %s3 = inlined_call_operand.hbm [shape: f32[2,8,128], index: 3, kind: output, shape index: {}]
  %s4 = sld [smem:[#allocation0]]
  $region45: #{tpu_custom_call.1} parent=0
    _
  %s6 = ssub.s32 1, %s4
  %s7 = scalar_select 0, %s6, %s4
  $region1: #{tpu_custom_call.1} parent=0
    #allocation2 [shape = 'u8[8192]{0}', space=vmem, size = 0x2000, scoped, tag = 'output window, operand 0']
    #allocation3 [shape = 's32[2]{0}', space=sflag, size = 0x8, scoped, tag = 'scoped memory for tpu_custom_call.1']
    %8 = vsyncpa [#allocation3], 0
    %s9 = scalar_lea.sflag [#allocation3], 1
    %10 = vsyncpa %s9, 0
    loop: start=0, step=1, limit=4
    $region2: #{tpu_custom_call.1} parent=1 // loop_pre_header
      _
    $region3: #{tpu_custom_call.1} parent=1 // loop_header
      %s12 = sphi 0, %s16
      %p13 = scmp.ge.s32.totalorder %s12, 4
      %s22 = sphi 0, %s24
      %s25 = sphi 0, %s22
      %s26 = sphi 0, %s25
      %s42 = sphi 0, %s26
      %s46 = sphi 0, %s46
      %s48 = sphi 0, %s46
      %s49 = sphi 0, %s48
      %s63 = sphi 0, %s49
      %s67 = sphi 0, %s67
      %s69 = sphi 0, %s67
      %s70 = sphi 0, %s69
      %s84 = sphi 0, %s70
      %s90 = sphi 0, %s92
      %s93 = sphi 0, %s90
      %s94 = sphi 0, %s93
      %s110 = sphi 0, %s94
    $region4: #{tpu_custom_call.1} parent=1 // loop_header_branch
      %15 = sbr.rel (%p13) target = $region8
    $region5: #{tpu_custom_call.1} parent=1 // loop_body
      %s17 = ssub.s32 %s12, 1
      %s18 = ssub.s32 %s12, 2
      %s19 = sadd.s32 %s12, 1
      %s20 = ssub.s32 %s12, %s19
      %p21 = scmp.eq.s32.totalorder %s20, 0
      %s23 = sadd.s32 %s22, 1
      %s24 = scalar_select %p21, %s22, %s23
      %p27 = pneg %p21
      %p28 = scmp.eq.s32.totalorder %s12, 1
      %p29 = por %p27, %p28
      %p30 = scmp.ne.s32.totalorder %s22, %s25
      %p31 = scmp.eq.s32.totalorder %s12, 0
      %p32 = por %p30, %p31
      %p33 = scmp.ne.s32.totalorder %s22, %s25
      %p34 = scmp.eq.s32.totalorder %s17, 1
      %p35 = por %p33, %p34
      %p36 = scmp.ne.s32.totalorder %s25, %s26
      %p37 = scmp.eq.s32.totalorder %s17, 0
      %p38 = por %p36, %p37
      %p39 = scmp.ne.s32.totalorder %s25, %s26
      %p40 = scmp.eq.s32.totalorder %s18, 1
      %p41 = por %p39, %p40
      %p43 = scmp.ne.s32.totalorder %s26, %s42
      %p44 = scmp.eq.s32.totalorder %s18, 0
      %p45 = por %p43, %p44
      %s47 = sadd.s32 %s46, 1
      %p50 = scmp.eq.s32.totalorder %s12, 1
      %p51 = scmp.ne.s32.totalorder %s46, %s48
      %p52 = scmp.eq.s32.totalorder %s12, 0
      %p53 = por %p51, %p52
      %p54 = scmp.ne.s32.totalorder %s46, %s48
      %p55 = scmp.eq.s32.totalorder %s17, 1
      %p56 = por %p54, %p55
      %p57 = scmp.ne.s32.totalorder %s48, %s49
      %p58 = scmp.eq.s32.totalorder %s17, 0
      %p59 = por %p57, %p58
      %p60 = scmp.ne.s32.totalorder %s48, %s49
      %p61 = scmp.eq.s32.totalorder %s18, 1
      %p62 = por %p60, %p61
      %p64 = scmp.ne.s32.totalorder %s49, %s63
      %p65 = scmp.eq.s32.totalorder %s18, 0
      %p66 = por %p64, %p65
      %s68 = sadd.s32 %s67, 1
      %p71 = scmp.eq.s32.totalorder %s12, 1
      %p72 = scmp.ne.s32.totalorder %s67, %s69
      %p73 = scmp.eq.s32.totalorder %s12, 0
      %p74 = por %p72, %p73
      %p75 = scmp.ne.s32.totalorder %s67, %s69
      %p76 = scmp.eq.s32.totalorder %s17, 1
      %p77 = por %p75, %p76
      %p78 = scmp.ne.s32.totalorder %s69, %s70
      %p79 = scmp.eq.s32.totalorder %s17, 0
      %p80 = por %p78, %p79
      %p81 = scmp.ne.s32.totalorder %s69, %s70
      %p82 = scmp.eq.s32.totalorder %s18, 1
      %p83 = por %p81, %p82
      %p85 = scmp.ne.s32.totalorder %s70, %s84
      %p86 = scmp.eq.s32.totalorder %s18, 0
      %p87 = por %p85, %p86
      %s88 = ssub.s32 %s12, %s19
      %p89 = scmp.eq.s32.totalorder %s88, 0
      %s91 = sadd.s32 %s90, 1
      %s92 = scalar_select %p89, %s90, %s91
      %p95 = pneg %p89
      %p96 = scmp.eq.s32.totalorder %s12, 1
      %p97 = por %p95, %p96
      %p98 = scmp.ne.s32.totalorder %s90, %s93
      %p99 = scmp.eq.s32.totalorder %s12, 0
      %p100 = por %p98, %p99
      %p101 = scmp.ne.s32.totalorder %s90, %s93
      %p102 = scmp.eq.s32.totalorder %s17, 1
      %p103 = por %p101, %p102
      %p104 = scmp.ne.s32.totalorder %s93, %s94
      %p105 = scmp.eq.s32.totalorder %s17, 0
      %p106 = por %p104, %p105
      %p107 = scmp.ne.s32.totalorder %s93, %s94
      %p108 = scmp.eq.s32.totalorder %s18, 1
      %p109 = por %p107, %p108
      %p111 = scmp.ne.s32.totalorder %s94, %s110
      %p112 = scmp.eq.s32.totalorder %s18, 0
      %p113 = por %p111, %p112
      %p114 = scmp.le.s32.totalorder 1, %s12
      %p115 = scmp.lt.s32.totalorder %s12, 3
      %p116 = pnand %p114, %p115
      %p117 = pneg %p116
      // Predicated region
      $region9: #{tpu_custom_call.1} parent=5 // pred_check
        _
      $region10: #{tpu_custom_call.1} parent=5 // pred_check_branch
        %119 = sbr.rel (%p116) target = $region12
      $region11: #{tpu_custom_call.1} parent=5 // pred_region
        %s120 = ssub.s32 %s12, 1
        // Predicated region
        $region13: #{tpu_custom_call.1} parent=11 // pred_check
          %p121 = pneg %p59
        $region14: #{tpu_custom_call.1} parent=11 // pred_check_branch
          %123 = sbr.rel (%p121) target = $region16
        $region15: #{tpu_custom_call.1} parent=11 // pred_region
          _
        $region16: #{tpu_custom_call.1} parent=11 // pred_fallthru
          _
        // Predicated region
        $region17: #{tpu_custom_call.1} parent=11 // pred_check
          %p124 = pneg %p80
        $region18: #{tpu_custom_call.1} parent=11 // pred_check_branch
          %126 = sbr.rel (%p124) target = $region20
        $region19: #{tpu_custom_call.1} parent=11 // pred_region
          _
        $region20: #{tpu_custom_call.1} parent=11 // pred_fallthru
          _
      $region12: #{tpu_custom_call.1} parent=5 // pred_fallthru
        _
      %p127 = scmp.lt.s32.totalorder %s12, 2
      // Predicated region
      $region21: #{tpu_custom_call.1} parent=5 // pred_check
        %p128 = pneg %p127
      $region22: #{tpu_custom_call.1} parent=5 // pred_check_branch
        %130 = sbr.rel (%p128) target = $region24
      $region23: #{tpu_custom_call.1} parent=5 // pred_region
        // Predicated region
        $region25: #{tpu_custom_call.1} parent=23 // pred_check
          %p131 = pneg %p32
        $region26: #{tpu_custom_call.1} parent=23 // pred_check_branch
          %133 = sbr.rel (%p131) target = $region28
        $region27: #{tpu_custom_call.1} parent=23 // pred_region
          %p134 = scmp.lt.s32.totalorder %s12, 1
          %s135 = scalar_select %p134, %s12, 1
          %s136 = smul.addr %s135, 8
          %s137 = scalar_lea.vmem %s0, %s136
        $region28: #{tpu_custom_call.1} parent=23 // pred_fallthru
          _
      $region24: #{tpu_custom_call.1} parent=5 // pred_fallthru
        _
      %p138 = scmp.le.s32.totalorder 1, %s12
      %p139 = scmp.lt.s32.totalorder %s12, 3
      %p140 = pnand %p138, %p139
      %p141 = pneg %p140
      // Predicated region
      $region29: #{tpu_custom_call.1} parent=5 // pred_check
        _
      $region30: #{tpu_custom_call.1} parent=5 // pred_check_branch
        %143 = sbr.rel (%p140) target = $region32
      $region31: #{tpu_custom_call.1} parent=5 // pred_region
        %s144 = ssub.s32 %s12, 1
        %p145 = scmp.lt.s32.totalorder %s17, 1
        %s146 = scalar_select %p145, %s17, 1
        %s147 = smul.addr %s146, 8
        %s148 = scalar_lea.vmem %s0, %s147
        %p149 = pneg %p38
        %p150 = pneg %p35
        %p151 = pneg %p59
        %p152 = pneg %p56
        %p153 = pneg %p80
        %p154 = pneg %p77
        %p155 = pneg %p106
        %p156 = pneg %p103
        %s157 = sand.u32 %s93, 1
        %s158 = scalar_lea.sflag [#allocation3], %s157
        %s159 = sand.u32 %s93, 1
        %s160 = smul.addr %s159, 8
        %s161 = scalar_lea.vmem [#allocation2], %s160
        %p162 = scmp.lt.s32.totalorder %s17, 1
        %s163 = scalar_select %p162, %s17, 1
        %s164 = smul.addr %s163, 8
        %s165 = scalar_lea.vmem %s0, %s164
        %v166 = vld [vmem:[%s165] sm:$0xff]
        %167 = vadd.xlane.f32.xlu0 %v166
        %v168 = vpop.xlane.xlu0 %167
        %v169 = vrot.slane %v168, 4
        %v170 = vadd.f32 %v168, %v169
        %v171 = vrot.slane %v170, 2
        %v172 = vadd.f32 %v170, %v171
        %v173 = vrot.slane %v172, 1
        %v174 = vadd.f32 %v172, %v173
        %s175 = vtos %v174
        %s176 = sadd.f32 %s175, 0.0
        %v177 = vmul.f32 %v166, %v166
        %178 = vadd.xlane.f32.xlu0 %v177
        %v179 = vpop.xlane.xlu0 %178
        %v180 = vrot.slane %v179, 4
        %v181 = vadd.f32 %v179, %v180
        %v182 = vrot.slane %v181, 2
        %v183 = vadd.f32 %v181, %v182
        %v184 = vrot.slane %v183, 1
        %v185 = vadd.f32 %v183, %v184
        %s186 = vtos %v185
        %s187 = sadd.f32 %s186, 0.0
        %v188 = vrcp.pop 1024.0
        %s189 = vtos %v188
        %s190 = smul.f32 %s176, %s189
        %s191 = smul.f32 %s176, %s190
        %s192 = ssub.f32 %s187, %s191
        %v193 = vrcp.pop 1023.0
        %s194 = vtos %v193
        %s195 = smul.f32 %s192, %s194
        %s196 = smax.f32 %s195, 0.0
        %v197 = vstv %s196
        %v198 = vrsqrt.pop %v197
        %v199 = vmul.f32 %v197, %v198
        %vm200 = vcmp.eq.f32.partialorder %v197, inf
        %v201 = vsel %vm200, %v197, %v199
        %vm202 = vcmp.eq.f32.partialorder %v197, 0.0
        %v203 = vand.u32 %v197, 2147483648
        %v204 = vsel %vm202, %v203, %v201
        %s205 = vtos %v204
        %s206 = sadd.f32 %s205, 1e-05
        %v207 = vstv %s206
        %v208 = vrcp.pop %v207
        %s209 = vtos %v208
        %v210 = vld [vmem:[%s1] sm:$0xff]
        %v211 = vld [vmem:[%s2] sm:$0xff]
        %v212 = vstv %s209
        %v213 = vmul.f32 %v210, %v212
        %v214 = vstv %s190
        %v215 = vmul.f32 %v214, %v213
        %v216 = vsub.f32 %v211, %v215
        %218 = vset.pattern.permute.xlu0 0
        %219 = vperm.xlu0 %218, %v213
        %v220 = vpop.permute.xlu0 %219
        %v222 = vmul.f32 %v166, %v220
        %224 = vset.pattern.permute.xlu0 0
        %225 = vperm.xlu0 %224, %v216
        %v226 = vpop.permute.xlu0 %225
        %v228 = vadd.f32 %v222, %v226
        %229 = vst [vmem:[%s161] sm:$0xff] %v228
        %s230 = sand.u32 %s93, 1
        %s231 = scalar_lea.sflag [#allocation3], %s230
        %s232 = sand.u32 %s93, 1
        %s233 = smul.addr %s232, 8
        %s234 = scalar_lea.vmem [#allocation2], %s233
        // Predicated region
        $region33: #{tpu_custom_call.1} parent=31 // pred_check
          %p235 = pneg %p103
        $region34: #{tpu_custom_call.1} parent=31 // pred_check_branch
          %237 = sbr.rel (%p235) target = $region36
        $region35: #{tpu_custom_call.1} parent=31 // pred_region
          %s239 = ssub.s32 128, 128
          %240 = vsyncadd %s231, %s239
          %s241 = smul.addr %s17, 128
          %s242 = scalar_lea.hbm %s3, %s241
          %s244 = sshll.u32 %s234, 4
          %s245 = int_to_ptr.vmem [resolvable:$true] %s244
          %247 = dma.vmem_to_hbm [thread:$0]  %s245, 128, %s242, %s231
        $region36: #{tpu_custom_call.1} parent=31 // pred_fallthru
          _
      $region32: #{tpu_custom_call.1} parent=5 // pred_fallthru
        _
      %p248 = scmp.le.s32.totalorder 2, %s12
      // Predicated region
      $region37: #{tpu_custom_call.1} parent=5 // pred_check
        %p249 = pneg %p248
      $region38: #{tpu_custom_call.1} parent=5 // pred_check_branch
        %251 = sbr.rel (%p249) target = $region40
      $region39: #{tpu_custom_call.1} parent=5 // pred_region
        %s252 = ssub.s32 %s12, 2
        // Predicated region
        $region41: #{tpu_custom_call.1} parent=39 // pred_check
          %p253 = pneg %p109
        $region42: #{tpu_custom_call.1} parent=39 // pred_check_branch
          %255 = sbr.rel (%p253) target = $region44
        $region43: #{tpu_custom_call.1} parent=39 // pred_region
          %s256 = sand.u32 %s94, 1
          %s257 = scalar_lea.sflag [#allocation3], %s256
          %s258 = sand.u32 %s94, 1
          %s259 = smul.addr %s258, 8
          %s260 = scalar_lea.vmem [#allocation2], %s259
          %261 = dma.done %s257, 128
        $region44: #{tpu_custom_call.1} parent=39 // pred_fallthru
          _
      $region40: #{tpu_custom_call.1} parent=5 // pred_fallthru
        _
    $region6: #{tpu_custom_call.1} parent=1 // loop_footer
      %s16 = sadd.s32 1, %s12
    $region7: #{tpu_custom_call.1} parent=1 // loop_footer_branch
      %11 = sbr.rel target = $region3
    $region8: #{tpu_custom_call.1} parent=1 // loop_exit
      _
    %262 = vsyncpa [#allocation3], 1
    %s263 = scalar_lea.sflag [#allocation3], 1
    %264 = vsyncpa %s263, 1

</llo_original>
